<compile_context>
chip_gen: v6e
topology: v6e:2x2x1
jax: 0.10.0
libtpu: 0.0.40
codegen_flags: <defaults>
</compile_context>

<pallas_src>
import jax
import jax.numpy as jnp
from jax.experimental import pallas as pl
from jax.experimental.pallas import tpu as pltpu


# ---------------------------------------------------------------------------
# Pass-1 kernels (batch statistics; the "materialize" variant also emits y)
# ---------------------------------------------------------------------------

def conv_emit_stats_kernel(w_ref, x_ref, y_ref, s_ref, ss_ref):
    """y = W @ x (bias-free) for one pixel tile; accumulate per-channel sum / sum-of-squares."""
    @pl.when(pl.program_id(2) == 0)
    def _():
        s_ref[...] = jnp.zeros_like(s_ref)
        ss_ref[...] = jnp.zeros_like(ss_ref)

    y = jnp.dot(w_ref[...], x_ref[...], preferred_element_type=jnp.float32)
    y_ref[...] = y
    s_ref[...] += jnp.sum(y, axis=-1, keepdims=True)
    ss_ref[...] += jnp.sum(y * y, axis=-1, keepdims=True)


def x_stats_kernel(x_ref, sx_ref, g_ref):
    """Weight-free stats for one pixel tile: per-channel sum of x and Gram x @ x^T (MXU)."""
    @pl.when(pl.program_id(2) == 0)
    def _():
        sx_ref[...] = jnp.zeros_like(sx_ref)
        g_ref[...] = jnp.zeros_like(g_ref)

    x = x_ref[...]
    sx_ref[...] += jnp.sum(x, axis=-1, keepdims=True)
    g_ref[...] += jnp.einsum("it,jt->ij", x, x, preferred_element_type=jnp.float32)


# ---------------------------------------------------------------------------
# Pass-2 kernels
# ---------------------------------------------------------------------------

def affine_kernel(scale_ref, shift_ref, y_ref, o_ref):
    """out = scale * y + shift (pure per-channel affine over the materialized conv output)."""
    o_ref[...] = (y_ref[...] * scale_ref[...] + shift_ref[...]).astype(o_ref.dtype)


def conv_affine_kernel(ws_ref, shift_ref, x_ref, o_ref):
    """out = (scale * W) @ x + shift (recompute path: conv + BN affine fused)."""
    y = jnp.dot(ws_ref[...], x_ref[...], preferred_element_type=jnp.float32)
    o_ref[...] = (y + shift_ref[...]).astype(o_ref.dtype)


# ---------------------------------------------------------------------------
# Tiling helpers
# ---------------------------------------------------------------------------

def _vmem_budget_and_limit():
    """Generation-aware working-set budget and the scoped-VMEM limit to request."""
    phys = 64 << 20  # conservative default: v7x per-TensorCore physical VMEM
    try:
        info = pltpu.get_tpu_info()
        phys = int(getattr(info, "vmem_capacity_bytes", phys)) or phys
    except Exception:
        pass
    phys = max(phys, 32 << 20)
    limit = min(phys * 3 // 4, 112 << 20)   # leave >= 25% physical headroom
    budget = limit * 7 // 10                # double-buffered per-step working-set target
    return budget, limit


def _pick_tile(hw, per_pixel_f32, max_tile, budget_bytes):
    """Pixel-tile size and (possibly padded) pixel extent.

    Preference: (a) one full-extent block, (b) the largest multiple-of-128 tile within budget
    that divides HW exactly (no out-of-kernel pad / slice), (c) pad HW up to a multiple of the
    largest fitting tile.
    """
    def fits(t):
        return 2 * per_pixel_f32 * 4 * t <= budget_bytes  # double-buffered f32 blocks

    if hw <= max_tile and fits(hw):
        return hw, hw

    t_max = max(128, (min(max_tile, hw) // 128) * 128)
    while t_max > 128 and not fits(t_max):
        t_max -= 128

    t = t_max
    while t >= 128 and 2 * t >= t_max:      # accept an exact divisor within 2x of the best tile
        if hw % t == 0:
            return t, hw
        t -= 128

    # TODO(synk): handle the ragged tail in-kernel (masked store) instead of pad + slice.
    hw_pad = pl.cdiv(hw, t_max) * t_max
    return t_max, hw_pad


# ---------------------------------------------------------------------------
# Forward wrapper
# ---------------------------------------------------------------------------

def out_conv_forward(x, w, b, gamma, beta, eps=1e-5, tile_m=8192):
    """x: (N, C_in, H, W) f32 -> (N, C_out, H, W) f32. Conv2d(k=1) + BatchNorm2d (batch stats)."""
    # The conv bias cancels exactly under BatchNorm's mean subtraction for the forward output.
    # (If running_mean were exported, b would need to be added back; not part of this forward.)
    del b
    N, Cin, H, W = x.shape
    Cout = w.shape[0]
    HW = H * W
    M = N * HW  # true pixel count for the batch statistics

    budget, vmem_limit = _vmem_budget_and_limit()
    tile, hw_pad = _pick_tile(HW, Cin + Cout, tile_m, budget)

    x3 = x.reshape(N, Cin, HW)  # free reshape, no transpose
    if hw_pad != HW:
        # Zero pixels contribute 0 to the bias-free sums, so the statistics stay exact.
        x3 = jnp.pad(x3, ((0, 0), (0, 0), (0, hw_pad - HW)))

    n_tiles = hw_pad // tile
    # Split the pixel axis into (parallel chunk, arbitrary step): distinct per-(n, chunk)
    # stat partials keep v7x's second TensorCore busy even for N == 1 / odd N.
    n_chunks = 2 if (n_tiles % 2 == 0 and n_tiles >= 2) else 1
    tpc = n_tiles // n_chunks

    w2 = w.reshape(Cout, Cin).astype(jnp.float32)

    cparams1 = pltpu.CompilerParams(
        dimension_semantics=("parallel", "parallel", "arbitrary"),
        vmem_limit_bytes=vmem_limit)
    cparams2 = pltpu.CompilerParams(
        dimension_semantics=("parallel", "parallel"),
        vmem_limit_bytes=vmem_limit)

    grid1 = (N, n_chunks, tpc)
    x_spec1 = pl.BlockSpec((pl.Squeezed(), Cin, tile), lambda n, c, j: (n, 0, c * tpc + j))

    materialize = 2 * Cout < Cin  # typical OutConv regime: many input channels, few classes

    if materialize:
        # Pass 1: bias-free conv written to HBM + per-(n, chunk) channel sums / sum-of-squares.
        y3, s_part, ss_part = pl.pallas_call(
            conv_emit_stats_kernel,
            out_shape=(
                jax.ShapeDtypeStruct((N, Cout, hw_pad), jnp.float32),
                jax.ShapeDtypeStruct((N * n_chunks, Cout, 1), jnp.float32),
                jax.ShapeDtypeStruct((N * n_chunks, Cout, 1), jnp.float32),
            ),
            grid_spec=pltpu.PrefetchScalarGridSpec(
                num_scalar_prefetch=0,
                grid=grid1,
                in_specs=[
                    pl.BlockSpec((Cout, Cin), lambda n, c, j: (0, 0)),
                    x_spec1,
                ],
                out_specs=[
                    pl.BlockSpec((pl.Squeezed(), Cout, tile),
                                 lambda n, c, j: (n, 0, c * tpc + j)),
                    pl.BlockSpec((pl.Squeezed(), Cout, 1),
                                 lambda n, c, j: (n * n_chunks + c, 0, 0)),
                    pl.BlockSpec((pl.Squeezed(), Cout, 1),
                                 lambda n, c, j: (n * n_chunks + c, 0, 0)),
                ],
            ),
            compiler_params=cparams1,
        )(w2, x3)

        s = jnp.sum(s_part, axis=0)          # (Cout, 1)
        ss = jnp.sum(ss_part, axis=0)        # (Cout, 1)
        mean = s / M
        # NOTE: E[y^2]-E[y]^2 in f32; clamp guards tiny negatives from cancellation.
        var = jnp.maximum(ss / M - mean * mean, 0.0)
        inv_std = jax.lax.rsqrt(var + eps)
        scale = gamma.reshape(Cout, 1) * inv_std
        shift = beta.reshape(Cout, 1) - mean * scale

        # Pass 2: pure per-channel affine over y; output aliases y (in-place normalize).
        out3 = pl.pallas_call(
            affine_kernel,
            out_shape=jax.ShapeDtypeStruct((N, Cout, hw_pad), jnp.float32),
            grid_spec=pltpu.PrefetchScalarGridSpec(
                num_scalar_prefetch=0,
                grid=(N, n_tiles),
                in_specs=[
                    pl.BlockSpec((Cout, 1), lambda n, j: (0, 0)),
                    pl.BlockSpec((Cout, 1), lambda n, j: (0, 0)),
                    pl.BlockSpec((pl.Squeezed(), Cout, tile), lambda n, j: (n, 0, j)),
                ],
                out_specs=pl.BlockSpec((pl.Squeezed(), Cout, tile), lambda n, j: (n, 0, j)),
            ),
            compiler_params=cparams2,
            input_output_aliases={2: 0},
        )(scale, shift, y3)
    else:
        # Pass 1: weight-free x statistics (per-channel sums + Gram); no conv output in HBM.
        sx_part, g_part = pl.pallas_call(
            x_stats_kernel,
            out_shape=(
                jax.ShapeDtypeStruct((N * n_chunks, Cin, 1), jnp.float32),
                jax.ShapeDtypeStruct((N * n_chunks, Cin, Cin), jnp.float32),
            ),
            grid_spec=pltpu.PrefetchScalarGridSpec(
                num_scalar_prefetch=0,
                grid=grid1,
                in_specs=[x_spec1],
                out_specs=[
                    pl.BlockSpec((pl.Squeezed(), Cin, 1),
                                 lambda n, c, j: (n * n_chunks + c, 0, 0)),
                    pl.BlockSpec((pl.Squeezed(), Cin, Cin),
                                 lambda n, c, j: (n * n_chunks + c, 0, 0)),
                ],
            ),
            compiler_params=cparams1,
        )(x3)

        sum_x = jnp.sum(sx_part, axis=0)     # (Cin, 1)
        gram = jnp.sum(g_part, axis=0)       # (Cin, Cin)
        mean = (w2 @ sum_x) / M              # bias-free conv channel means, (Cout, 1)
        ey2 = jnp.sum((w2 @ gram) * w2, axis=1, keepdims=True) / M
        var = jnp.maximum(ey2 - mean * mean, 0.0)
        inv_std = jax.lax.rsqrt(var + eps)
        scale = gamma.reshape(Cout, 1) * inv_std
        shift = beta.reshape(Cout, 1) - mean * scale
        w_scaled = scale * w2                # fold the BatchNorm scale into the conv weights

        # Pass 2: recompute the cheap (Cout, Cin) @ (Cin, tile) matmul + affine (fully parallel).
        out3 = pl.pallas_call(
            conv_affine_kernel,
            out_shape=jax.ShapeDtypeStruct((N, Cout, hw_pad), jnp.float32),
            grid_spec=pltpu.PrefetchScalarGridSpec(
                num_scalar_prefetch=0,
                grid=(N, n_tiles),
                in_specs=[
                    pl.BlockSpec((Cout, Cin), lambda n, j: (0, 0)),
                    pl.BlockSpec((Cout, 1), lambda n, j: (0, 0)),
                    pl.BlockSpec((pl.Squeezed(), Cin, tile), lambda n, j: (n, 0, j)),
                ],
                out_specs=pl.BlockSpec((pl.Squeezed(), Cout, tile), lambda n, j: (n, 0, j)),
            ),
            compiler_params=cparams2,
        )(w_scaled, shift, x3)

    if hw_pad != HW:
        out3 = out3[:, :, :HW]
    return out3.reshape(N, Cout, H, W)


def reference_forward(x, w, b, gamma, beta, eps=1e-5):
    """Pure-JAX reference matching PyTorch Conv2d(k=1) + BatchNorm2d (training mode)."""
    y = jnp.einsum("oi,nihw->nohw", w.reshape(w.shape[0], w.shape[1]), x) + b.reshape(1, -1, 1, 1)
    mean = jnp.mean(y, axis=(0, 2, 3), keepdims=True)
    var = jnp.mean((y - mean) ** 2, axis=(0, 2, 3), keepdims=True)
    return (y - mean) / jnp.sqrt(var + eps) * gamma.reshape(1, -1, 1, 1) + beta.reshape(1, -1, 1, 1)


if __name__ == "__main__":
    def run_case(key, N, C_in, C_out, H, W):
        kx, kw, kb, kg, kbeta = jax.random.split(key, 5)
        x = jax.random.normal(kx, (N, C_in, H, W), dtype=jnp.float32)
        # Conv2d(in, out, kernel_size=1): weight (out, in, 1, 1), bias (out,)
        w = 0.1 * jax.random.normal(kw, (C_out, C_in, 1, 1), dtype=jnp.float32)
        b = 0.1 * jax.random.normal(kb, (C_out,), dtype=jnp.float32)
        gamma = 1.0 + 0.05 * jax.random.normal(kg, (C_out,), dtype=jnp.float32)
        beta = 0.05 * jax.random.normal(kbeta, (C_out,), dtype=jnp.float32)

        out = jax.jit(out_conv_forward)(x, w, b, gamma, beta)
        out = jax.block_until_ready(out)
        ref = reference_forward(x, w, b, gamma, beta)
        assert out.shape == (N, C_out, H, W)
        assert jnp.allclose(out, ref, atol=1e-4, rtol=1e-4), "mismatch vs reference"

    key = jax.random.PRNGKey(0)
    k1, k2 = jax.random.split(key)
    # Recompute-from-x path (Cout >= Cin/2): the module's given small config.
    run_case(k1, 2, 4, 6, 16, 16)
    # Materialize-y path (2*Cout < Cin): the typical OutConv regime (many channels, few classes).
    run_case(k2, 2, 32, 2, 16, 16)

    print("KERNEL_OK")
</pallas_src>

<mosaic_0001>
module attributes {stable_mosaic.version = 11 : i64} {
  func.func @x_stats_kernel(%arg0: i32, %arg1: i32, %arg2: i32, %arg3: memref<1x4x256xf32, #tpu.memory_space<vmem>>, %arg4: memref<1x4x1xf32, #tpu.memory_space<vmem>>, %arg5: memref<1x4x4xf32, #tpu.memory_space<vmem>>) attributes {dimension_semantics = [#tpu.dimension_semantics<parallel>, #tpu.dimension_semantics<parallel>, #tpu.dimension_semantics<arbitrary>], iteration_bounds = array<i64: 2, 1, 1>, scalar_prefetch = 0 : i64, scratch_operands = 0 : i64, tpu.core_type = #tpu.core_type<tc>, window_params = [{transform_indices = @transform_0, window_bounds = array<i64: 1, 4, 256>}, {transform_indices = @transform_1, window_bounds = array<i64: 1, 4, 1>}, {transform_indices = @transform_2, window_bounds = array<i64: 1, 4, 4>}]} {
    %c0_i32 = arith.constant 0 : i32
    %0 = arith.cmpi eq, %arg2, %c0_i32 : i32
    %1 = arith.extui %0 : i1 to i32
    %c0_i32_0 = arith.constant 0 : i32
    %2 = arith.cmpi ne, %1, %c0_i32_0 : i32
    scf.if %2 {
      %cst_16 = arith.constant 0.000000e+00 : f32
      %20 = vector.broadcast %cst_16 : f32 to vector<4x1xf32>
      %c0_17 = arith.constant 0 : index
      %c0_18 = arith.constant 0 : index
      %c0_19 = arith.constant 0 : index
      %21 = vector.load %arg4[%c0_17, %c0_18, %c0_19] : memref<1x4x1xf32, #tpu.memory_space<vmem>>, vector<1x4x1xf32>
      %22 = vector.shape_cast %21 : vector<1x4x1xf32> to vector<4x1xf32>
      %23 = vector.shape_cast %20 : vector<4x1xf32> to vector<1x4x1xf32>
      tpu.vector_store %arg4[%c0_17, %c0_18, %c0_19], %23 {strides = array<i32>} : memref<1x4x1xf32, #tpu.memory_space<vmem>>, vector<1x4x1xf32>,
      %cst_20 = arith.constant 0.000000e+00 : f32
      %24 = vector.broadcast %cst_20 : f32 to vector<4x4xf32>
      %c0_21 = arith.constant 0 : index
      %c0_22 = arith.constant 0 : index
      %c0_23 = arith.constant 0 : index
      %25 = vector.load %arg5[%c0_21, %c0_22, %c0_23] : memref<1x4x4xf32, #tpu.memory_space<vmem>>, vector<1x4x4xf32>
      %26 = vector.shape_cast %25 : vector<1x4x4xf32> to vector<4x4xf32>
      %27 = vector.shape_cast %24 : vector<4x4xf32> to vector<1x4x4xf32>
      tpu.vector_store %arg5[%c0_21, %c0_22, %c0_23], %27 {strides = array<i32>} : memref<1x4x4xf32, #tpu.memory_space<vmem>>, vector<1x4x4xf32>,
    } else {
    }
    %c0 = arith.constant 0 : index
    %c0_1 = arith.constant 0 : index
    %c0_2 = arith.constant 0 : index
    %3 = vector.load %arg3[%c0, %c0_1, %c0_2] : memref<1x4x256xf32, #tpu.memory_space<vmem>>, vector<1x4x256xf32>
    %4 = vector.shape_cast %3 : vector<1x4x256xf32> to vector<4x256xf32>
    %c0_3 = arith.constant 0 : index
    %c0_4 = arith.constant 0 : index
    %c0_5 = arith.constant 0 : index
    %5 = vector.load %arg4[%c0_3, %c0_4, %c0_5] : memref<1x4x1xf32, #tpu.memory_space<vmem>>, vector<1x4x1xf32>
    %6 = vector.shape_cast %5 : vector<1x4x1xf32> to vector<4x1xf32>
    %cst = arith.constant dense<0.000000e+00> : vector<4xf32>
    %7 = vector.multi_reduction <add>, %4, %cst [1] : vector<4x256xf32> to vector<4xf32>
    %8 = vector.shape_cast %7 : vector<4xf32> to vector<4x1xf32>
    %9 = arith.addf %6, %8 : vector<4x1xf32>
    %c0_6 = arith.constant 0 : index
    %c0_7 = arith.constant 0 : index
    %c0_8 = arith.constant 0 : index
    %10 = vector.load %arg4[%c0_6, %c0_7, %c0_8] : memref<1x4x1xf32, #tpu.memory_space<vmem>>, vector<1x4x1xf32>
    %11 = vector.shape_cast %10 : vector<1x4x1xf32> to vector<4x1xf32>
    %12 = vector.shape_cast %9 : vector<4x1xf32> to vector<1x4x1xf32>
    tpu.vector_store %arg4[%c0_6, %c0_7, %c0_8], %12 {strides = array<i32>} : memref<1x4x1xf32, #tpu.memory_space<vmem>>, vector<1x4x1xf32>,
    %c0_9 = arith.constant 0 : index
    %c0_10 = arith.constant 0 : index
    %c0_11 = arith.constant 0 : index
    %13 = vector.load %arg5[%c0_9, %c0_10, %c0_11] : memref<1x4x4xf32, #tpu.memory_space<vmem>>, vector<1x4x4xf32>
    %14 = vector.shape_cast %13 : vector<1x4x4xf32> to vector<4x4xf32>
    "tpu.trace_start"() <{level = 10 : i32, message = "it,jt->ij"}> : () -> ()
    %cst_12 = arith.constant dense<0.000000e+00> : vector<4x4xf32>
    %15 = tpu.matmul %4, %4, %cst_12 {dimension_numbers = #tpu.dot_dimension_numbers<[1], [1], [0], [0], [0, 0, 1, 0], [], []>} : vector<4x256xf32>, vector<4x256xf32>, vector<4x4xf32> -> vector<4x4xf32>
    "tpu.trace_stop"() : () -> ()
    %16 = arith.addf %14, %15 : vector<4x4xf32>
    %c0_13 = arith.constant 0 : index
    %c0_14 = arith.constant 0 : index
    %c0_15 = arith.constant 0 : index
    %17 = vector.load %arg5[%c0_13, %c0_14, %c0_15] : memref<1x4x4xf32, #tpu.memory_space<vmem>>, vector<1x4x4xf32>
    %18 = vector.shape_cast %17 : vector<1x4x4xf32> to vector<4x4xf32>
    %19 = vector.shape_cast %16 : vector<4x4xf32> to vector<1x4x4xf32>
    tpu.vector_store %arg5[%c0_13, %c0_14, %c0_15], %19 {strides = array<i32>} : memref<1x4x4xf32, #tpu.memory_space<vmem>>, vector<1x4x4xf32>,
    return
  }
  func.func @transform_0(%arg0: i32, %arg1: i32, %arg2: i32) -> (i32, i32, i32) {
    %c1_i32 = arith.constant 1 : i32
    %0 = arith.muli %arg1, %c1_i32 : i32
    %1 = arith.addi %0, %arg2 : i32
    %c0_i32 = arith.constant 0 : i32
    %c0_i32_0 = arith.constant 0 : i32
    return %arg0, %c0_i32, %1 : i32, i32, i32
  }
  func.func @transform_1(%arg0: i32, %arg1: i32, %arg2: i32) -> (i32, i32, i32) {
    %c1_i32 = arith.constant 1 : i32
    %0 = arith.muli %arg0, %c1_i32 : i32
    %1 = arith.addi %0, %arg1 : i32
    %c0_i32 = arith.constant 0 : i32
    %c0_i32_0 = arith.constant 0 : i32
    %c0_i32_1 = arith.constant 0 : i32
    return %1, %c0_i32, %c0_i32_0 : i32, i32, i32
  }
  func.func @transform_2(%arg0: i32, %arg1: i32, %arg2: i32) -> (i32, i32, i32) {
    %c1_i32 = arith.constant 1 : i32
    %0 = arith.muli %arg0, %c1_i32 : i32
    %1 = arith.addi %0, %arg1 : i32
    %c0_i32 = arith.constant 0 : i32
    %c0_i32_0 = arith.constant 0 : i32
    %c0_i32_1 = arith.constant 0 : i32
    return %1, %c0_i32, %c0_i32_0 : i32, i32, i32
  }
}

module attributes {stable_mosaic.version = 11 : i64} {
  func.func @conv_affine_kernel(%arg0: i32, %arg1: i32, %arg2: memref<6x4xf32, #tpu.memory_space<vmem>>, %arg3: memref<6x1xf32, #tpu.memory_space<vmem>>, %arg4: memref<1x4x256xf32, #tpu.memory_space<vmem>>, %arg5: memref<1x6x256xf32, #tpu.memory_space<vmem>>) attributes {dimension_semantics = [#tpu.dimension_semantics<parallel>, #tpu.dimension_semantics<parallel>], iteration_bounds = array<i64: 2, 1>, scalar_prefetch = 0 : i64, scratch_operands = 0 : i64, tpu.core_type = #tpu.core_type<tc>, window_params = [{pipeline_mode = #tpu.pipeline_mode<synchronous>, transform_indices = @transform_0, window_bounds = array<i64: 6, 4>}, {pipeline_mode = #tpu.pipeline_mode<synchronous>, transform_indices = @transform_1, window_bounds = array<i64: 6, 1>}, {transform_indices = @transform_2, window_bounds = array<i64: 1, 4, 256>}, {transform_indices = @transform_3, window_bounds = array<i64: 1, 6, 256>}]} {
    %c0 = arith.constant 0 : index
    %c0_0 = arith.constant 0 : index
    %0 = vector.load %arg2[%c0, %c0_0] : memref<6x4xf32, #tpu.memory_space<vmem>>, vector<6x4xf32>
    %c0_1 = arith.constant 0 : index
    %c0_2 = arith.constant 0 : index
    %c0_3 = arith.constant 0 : index
    %1 = vector.load %arg4[%c0_1, %c0_2, %c0_3] : memref<1x4x256xf32, #tpu.memory_space<vmem>>, vector<1x4x256xf32>
    %2 = vector.shape_cast %1 : vector<1x4x256xf32> to vector<4x256xf32>
    %cst = arith.constant dense<0.000000e+00> : vector<6x256xf32>
    %3 = tpu.matmul %0, %2, %cst {dimension_numbers = #tpu.dot_dimension_numbers<[1], [0], [0], [1], [0, 0, 1, 1], [], []>} : vector<6x4xf32>, vector<4x256xf32>, vector<6x256xf32> -> vector<6x256xf32>
    %c0_4 = arith.constant 0 : index
    %c0_5 = arith.constant 0 : index
    %4 = vector.load %arg3[%c0_4, %c0_5] : memref<6x1xf32, #tpu.memory_space<vmem>>, vector<6x1xf32>
    %5 = vector.broadcast %4 : vector<6x1xf32> to vector<6x256xf32>
    %6 = arith.addf %3, %5 : vector<6x256xf32>
    %c0_6 = arith.constant 0 : index
    %c0_7 = arith.constant 0 : index
    %c0_8 = arith.constant 0 : index
    %7 = vector.load %arg5[%c0_6, %c0_7, %c0_8] : memref<1x6x256xf32, #tpu.memory_space<vmem>>, vector<1x6x256xf32>
    %8 = vector.shape_cast %7 : vector<1x6x256xf32> to vector<6x256xf32>
    %9 = vector.shape_cast %6 : vector<6x256xf32> to vector<1x6x256xf32>
    tpu.vector_store %arg5[%c0_6, %c0_7, %c0_8], %9 {strides = array<i32>} : memref<1x6x256xf32, #tpu.memory_space<vmem>>, vector<1x6x256xf32>,
    return
  }
  func.func @transform_0(%arg0: i32, %arg1: i32) -> (i32, i32) {
    %c0_i32 = arith.constant 0 : i32
    %c0_i32_0 = arith.constant 0 : i32
    %c0_i32_1 = arith.constant 0 : i32
    return %c0_i32, %c0_i32_0 : i32, i32
  }
  func.func @transform_1(%arg0: i32, %arg1: i32) -> (i32, i32) {
    %c0_i32 = arith.constant 0 : i32
    %c0_i32_0 = arith.constant 0 : i32
    %c0_i32_1 = arith.constant 0 : i32
    return %c0_i32, %c0_i32_0 : i32, i32
  }
  func.func @transform_2(%arg0: i32, %arg1: i32) -> (i32, i32, i32) {
    %c0_i32 = arith.constant 0 : i32
    %c0_i32_0 = arith.constant 0 : i32
    return %arg0, %c0_i32, %arg1 : i32, i32, i32
  }
  func.func @transform_3(%arg0: i32, %arg1: i32) -> (i32, i32, i32) {
    %c0_i32 = arith.constant 0 : i32
    %c0_i32_0 = arith.constant 0 : i32
    return %arg0, %c0_i32, %arg1 : i32, i32, i32
  }
}

</mosaic_0001>

<llo_original>
// kernel: out_conv_forward.2
$region0: #{out_conv_forward.2}
  #allocation0 [shape = 'u32[]', space=smem, size = 0x4, offset = 0x4, fixed_abs, tag = 'smem constant byte address 0x4 - core index']
  #allocation1 [shape = 'u32[144,128]{1,0:T(1,128)}', space=vmem, size = 0x12000, scoped, tag = 'internal scratch']
  %s0 = inlined_call_operand.vmem [shape: f32[2,4,256], index: 0, kind: input, shape index: {}]
  %s1 = inlined_call_operand.vmem [shape: f32[2,4,1], index: 1, kind: output, shape index: {0}]
  %s2 = inlined_call_operand.vmem [shape: f32[2,4,4], index: 2, kind: output, shape index: {1}]
  %3 = xla_tuple %s1, %s2
  %s4 = sld [smem:[#allocation0]]
  $region49: #{out_conv_forward.2} parent=0
    _
  %s6 = ssub.s32 1, %s4
  %s7 = scalar_select 0, %s6, %s4
  loop: start=0, step=1, limit=4
  $region2: #{out_conv_forward.2} parent=0 // loop_pre_header
    _
  $region3: #{out_conv_forward.2} parent=0 // loop_header
    %s9 = sphi 0, %s13
    %p10 = scmp.ge.s32.totalorder %s9, 4
    %s16 = sphi 0, %s35
    %s17 = sphi 0, %s31
    %s18 = sphi 0, %s27
    %s19 = sphi 0, %s16
    %s20 = sphi 0, %s17
    %s21 = sphi 0, %s18
    %s22 = sphi 0, %s19
    %s23 = sphi 0, %s20
    %s24 = sphi 0, %s21
    %s42 = sphi 0, %s44
    %s45 = sphi 0, %s42
    %s46 = sphi 0, %s45
    %s62 = sphi 0, %s46
    %s70 = sphi 0, %s72
    %s73 = sphi 0, %s70
    %s74 = sphi 0, %s73
    %s90 = sphi 0, %s74
    %s98 = sphi 0, %s100
    %s101 = sphi 0, %s98
    %s102 = sphi 0, %s101
    %s118 = sphi 0, %s102
  $region4: #{out_conv_forward.2} parent=0 // loop_header_branch
    %12 = sbr.rel (%p10) target = $region8
  $region5: #{out_conv_forward.2} parent=0 // loop_body
    %s14 = ssub.s32 %s9, 1
    %s15 = ssub.s32 %s9, 2
    %s25 = sadd.s32 1, %s18
    %p26 = scmp.ge.s32.totalorder %s25, 1
    %s27 = scalar_select %p26, 0, %s25
    %s28 = sadd.s32 1, %s17
    %s29 = scalar_select %p26, %s28, %s17
    %p30 = scmp.ge.s32.totalorder %s29, 1
    %s31 = scalar_select %p30, 0, %s29
    %s32 = sadd.s32 1, %s16
    %s33 = scalar_select %p30, %s32, %s16
    %p34 = scmp.ge.s32.totalorder %s33, 2
    %s35 = scalar_select %p34, 0, %s33
    %s36 = sadd.s32 %s17, %s18
    %s37 = sadd.s32 %s31, %s27
    %s38 = ssub.s32 %s16, %s35
    %s39 = ssub.s32 %s36, %s37
    %s40 = sor.u32 %s38, %s39
    %p41 = scmp.eq.s32.totalorder %s40, 0
    %s43 = sadd.s32 %s42, 1
    %s44 = scalar_select %p41, %s42, %s43
    %p47 = pneg %p41
    %p48 = scmp.eq.s32.totalorder %s9, 1
    %p49 = por %p47, %p48
    %p50 = scmp.ne.s32.totalorder %s42, %s45
    %p51 = scmp.eq.s32.totalorder %s9, 0
    %p52 = por %p50, %p51
    %p53 = scmp.ne.s32.totalorder %s42, %s45
    %p54 = scmp.eq.s32.totalorder %s14, 1
    %p55 = por %p53, %p54
    %p56 = scmp.ne.s32.totalorder %s45, %s46
    %p57 = scmp.eq.s32.totalorder %s14, 0
    %p58 = por %p56, %p57
    %p59 = scmp.ne.s32.totalorder %s45, %s46
    %p60 = scmp.eq.s32.totalorder %s15, 1
    %p61 = por %p59, %p60
    %p63 = scmp.ne.s32.totalorder %s46, %s62
    %p64 = scmp.eq.s32.totalorder %s15, 0
    %p65 = por %p63, %p64
    %s66 = sadd.s32 %s16, %s17
    %s67 = sadd.s32 %s35, %s31
    %s68 = ssub.s32 %s66, %s67
    %p69 = scmp.eq.s32.totalorder %s68, 0
    %s71 = sadd.s32 %s70, 1
    %s72 = scalar_select %p69, %s70, %s71
    %p75 = pneg %p69
    %p76 = scmp.eq.s32.totalorder %s9, 1
    %p77 = por %p75, %p76
    %p78 = scmp.ne.s32.totalorder %s70, %s73
    %p79 = scmp.eq.s32.totalorder %s9, 0
    %p80 = por %p78, %p79
    %p81 = scmp.ne.s32.totalorder %s70, %s73
    %p82 = scmp.eq.s32.totalorder %s14, 1
    %p83 = por %p81, %p82
    %p84 = scmp.ne.s32.totalorder %s73, %s74
    %p85 = scmp.eq.s32.totalorder %s14, 0
    %p86 = por %p84, %p85
    %p87 = scmp.ne.s32.totalorder %s73, %s74
    %p88 = scmp.eq.s32.totalorder %s15, 1
    %p89 = por %p87, %p88
    %p91 = scmp.ne.s32.totalorder %s74, %s90
    %p92 = scmp.eq.s32.totalorder %s15, 0
    %p93 = por %p91, %p92
    %s94 = sadd.s32 %s16, %s17
    %s95 = sadd.s32 %s35, %s31
    %s96 = ssub.s32 %s94, %s95
    %p97 = scmp.eq.s32.totalorder %s96, 0
    %s99 = sadd.s32 %s98, 1
    %s100 = scalar_select %p97, %s98, %s99
    %p103 = pneg %p97
    %p104 = scmp.eq.s32.totalorder %s9, 1
    %p105 = por %p103, %p104
    %p106 = scmp.ne.s32.totalorder %s98, %s101
    %p107 = scmp.eq.s32.totalorder %s9, 0
    %p108 = por %p106, %p107
    %p109 = scmp.ne.s32.totalorder %s98, %s101
    %p110 = scmp.eq.s32.totalorder %s14, 1
    %p111 = por %p109, %p110
    %p112 = scmp.ne.s32.totalorder %s101, %s102
    %p113 = scmp.eq.s32.totalorder %s14, 0
    %p114 = por %p112, %p113
    %p115 = scmp.ne.s32.totalorder %s101, %s102
    %p116 = scmp.eq.s32.totalorder %s15, 1
    %p117 = por %p115, %p116
    %p119 = scmp.ne.s32.totalorder %s102, %s118
    %p120 = scmp.eq.s32.totalorder %s15, 0
    %p121 = por %p119, %p120
    %p122 = scmp.le.s32.totalorder 1, %s9
    %p123 = scmp.lt.s32.totalorder %s9, 3
    %p124 = pnand %p122, %p123
    %p125 = pneg %p124
    // Predicated region
    $region9: #{out_conv_forward.2} parent=5 // pred_check
      _
    $region10: #{out_conv_forward.2} parent=5 // pred_check_branch
      %127 = sbr.rel (%p124) target = $region12
    $region11: #{out_conv_forward.2} parent=5 // pred_region
      %s128 = ssub.s32 %s9, 1
    $region12: #{out_conv_forward.2} parent=5 // pred_fallthru
      _
    %p129 = scmp.lt.s32.totalorder %s9, 2
    // Predicated region
    $region13: #{out_conv_forward.2} parent=5 // pred_check
      %p130 = pneg %p129
    $region14: #{out_conv_forward.2} parent=5 // pred_check_branch
      %132 = sbr.rel (%p130) target = $region16
    $region15: #{out_conv_forward.2} parent=5 // pred_region
      // Predicated region
      $region17: #{out_conv_forward.2} parent=15 // pred_check
        %p133 = pneg %p52
      $region18: #{out_conv_forward.2} parent=15 // pred_check_branch
        %135 = sbr.rel (%p133) target = $region20
      $region19: #{out_conv_forward.2} parent=15 // pred_region
        %s136 = sadd.s32 %s17, %s18
        %s137 = smul.u32 2, %s136
        %p138 = scmp.lt.s32.totalorder %s16, 1
        %s139 = scalar_select %p138, %s16, 1
        %p140 = scmp.lt.s32.totalorder %s137, 1
        %s141 = scalar_select %p140, %s137, 1
        %s142 = smul.addr %s139, 2
        %s143 = sadd.s32 %s141, %s142
        %s144 = smul.addr %s143, 4
        %s145 = scalar_lea.vmem %s0, %s144
        %s146 = sadd.s32 %s17, %s18
        %s147 = smul.u32 2, %s146
      $region20: #{out_conv_forward.2} parent=15 // pred_fallthru
        _
    $region16: #{out_conv_forward.2} parent=5 // pred_fallthru
      _
    %p148 = scmp.le.s32.totalorder 1, %s9
    %p149 = scmp.lt.s32.totalorder %s9, 3
    %p150 = pnand %p148, %p149
    %p151 = pneg %p150
    // Predicated region
    $region21: #{out_conv_forward.2} parent=5 // pred_check
      _
    $region22: #{out_conv_forward.2} parent=5 // pred_check_branch
      %153 = sbr.rel (%p150) target = $region24
    $region23: #{out_conv_forward.2} parent=5 // pred_region
      %s154 = ssub.s32 %s9, 1
      %s155 = sadd.s32 %s20, %s21
      %s156 = smul.u32 2, %s155
      %p157 = scmp.lt.s32.totalorder %s19, 1
      %s158 = scalar_select %p157, %s19, 1
      %p159 = scmp.lt.s32.totalorder %s156, 1
      %s160 = scalar_select %p159, %s156, 1
      %s161 = smul.addr %s158, 2
      %s162 = sadd.s32 %s160, %s161
      %s163 = smul.addr %s162, 4
      %s164 = scalar_lea.vmem %s0, %s163
      %p165 = pneg %p58
      %p166 = pneg %p55
      %p167 = pneg %p86
      %p168 = pneg %p83
      %s169 = sadd.s32 %s19, %s20
      %p170 = scmp.lt.s32.totalorder %s169, 1
      %s171 = scalar_select %p170, %s169, 1
      %s172 = smul.addr %s171, 4
      %s173 = scalar_lea.vmem %s1, %s172
      %p174 = pneg %p114
      %p175 = pneg %p111
      %s176 = sadd.s32 %s19, %s20
      %p177 = scmp.lt.s32.totalorder %s176, 1
      %s178 = scalar_select %p177, %s176, 1
      %s179 = smul.addr %s178, 4
      %s180 = scalar_lea.vmem %s2, %s179
      %s181 = sadd.s32 %s20, %s21
      %s182 = smul.u32 2, %s181
      %p183 = scmp.lt.s32.totalorder %s19, 1
      %s184 = scalar_select %p183, %s19, 1
      %p185 = scmp.lt.s32.totalorder %s182, 1
      %s186 = scalar_select %p185, %s182, 1
      %s187 = smul.addr %s184, 2
      %s188 = sadd.s32 %s186, %s187
      %s189 = smul.addr %s188, 4
      %s190 = scalar_lea.vmem %s0, %s189
      %s191 = sadd.s32 %s20, %s21
      %s192 = smul.u32 2, %s191
      %s193 = sadd.s32 %s19, %s20
      %p194 = scmp.lt.s32.totalorder %s193, 1
      %s195 = scalar_select %p194, %s193, 1
      %s196 = smul.addr %s195, 4
      %s197 = scalar_lea.vmem %s1, %s196
      %s198 = sadd.s32 %s19, %s20
      %s199 = sadd.s32 %s19, %s20
      %p200 = scmp.lt.s32.totalorder %s199, 1
      %s201 = scalar_select %p200, %s199, 1
      %s202 = smul.addr %s201, 4
      %s203 = scalar_lea.vmem %s2, %s202
      %s204 = sadd.s32 %s19, %s20
      %p205 = scmp.eq.s32.totalorder %s21, 0
      // Predicated region
      $region25: #{out_conv_forward.2} parent=23 // pred_check
        %p206 = pneg %p205
      $region26: #{out_conv_forward.2} parent=23 // pred_check_branch
        %208 = sbr.rel (%p206) target = $region28
      $region27: #{out_conv_forward.2} parent=23 // pred_region
        %vm209 = vcmask 3072
        %210 = vst.msk [vmem:[%s197] sm:$0xf] %vm209, 0.0
        %vm211 = vcmask 27648
        %212 = vst.msk [vmem:[%s203] sm:$0xf] %vm211, 0.0
      $region28: #{out_conv_forward.2} parent=23 // pred_fallthru
        _
      %v213 = vld [vmem:[%s190] sm:$0xff]
      %v214 = vld [vmem:[%s197] sm:$0xf]
      %v216 = vcombine.high %v213, %v213
      %vm218 = vcmask 1043456
      %v219 = vsel %vm218, %v213, 0.0
      %v220 = vsel %vm218, %v216, 0.0
      %v221 = vadd.f32 %v219, %v220
      %222 = vadd.xlane.f32.xlu0 %v221
      %v223 = vpop.xlane.xlu0 %222
      %v224 = vadd.f32 %v214, %v223
      %vm225 = vcmask 3072
      %226 = vst.msk [vmem:[%s197] sm:$0xf] %vm225, %v224
      %v227 = vld [vmem:[%s203] sm:$0xf]
      %228 = vmatprep.subr.mxu0 0.0
      %229 = vmatpush1.xpose.msra.mxu0 0.0
      %230 = vmatprep.subr.mxu0 0.0
      %231 = vmatpush1.xpose.msra.mxu0 0.0
      %232 = vmatprep.subr.mxu0 0.0
      %233 = vmatpush1.xpose.msra.mxu0 0.0
      %234 = vmatprep.subr.mxu0 0.0
      %235 = vmatpush1.xpose.msra.mxu0 0.0
      %236 = vmatprep.subr.mxu0 0.0
      %237 = vmatpush1.xpose.msra.mxu0 0.0
      %238 = vmatprep.subr.mxu0 0.0
      %239 = vmatpush1.xpose.msra.mxu0 0.0
      %240 = vmatprep.subr.mxu0 0.0
      %241 = vmatpush1.xpose.msra.mxu0 0.0
      %242 = vmatprep.subr.mxu0 0.0
      %243 = vmatpush1.xpose.msra.mxu0 0.0
      %244 = vmatprep.subr.mxu0 0.0
      %245 = vmatpush1.xpose.msra.mxu0 0.0
      %246 = vmatprep.subr.mxu0 0.0
      %247 = vmatpush1.xpose.msra.mxu0 0.0
      %248 = vmatprep.subr.mxu0 0.0
      %249 = vmatpush1.xpose.msra.mxu0 0.0
      %250 = vmatprep.subr.mxu0 0.0
      %251 = vmatpush1.xpose.msra.mxu0 0.0
      %252 = vmatprep.subr.mxu0 0.0
      %253 = vmatpush1.xpose.msra.mxu0 0.0
      %254 = vmatprep.subr.mxu0 0.0
      %255 = vmatpush1.xpose.msra.mxu0 0.0
      %256 = vmatprep.subr.mxu0 0.0
      %257 = vmatpush1.xpose.msra.mxu0 0.0
      %258 = vmatprep.subr.mxu0 %v216
      %259 = vmatpush1.xpose.msra.mxu0 %v213
      %260 = vmatprep.subr.mxu0 0.0
      %261 = vmatpush2.xpose.msra.mxu0 0.0
      %262 = vmatprep.subr.mxu0 0.0
      %263 = vmatpush2.xpose.msra.mxu0 0.0
      %264 = vmatprep.subr.mxu0 0.0
      %265 = vmatpush2.xpose.msra.mxu0 0.0
      %266 = vmatprep.subr.mxu0 0.0
      %267 = vmatpush2.xpose.msra.mxu0 0.0
      %268 = vmatprep.subr.mxu0 0.0
      %269 = vmatpush2.xpose.msra.mxu0 0.0
      %270 = vmatprep.subr.mxu0 0.0
      %271 = vmatpush2.xpose.msra.mxu0 0.0
      %272 = vmatprep.subr.mxu0 0.0
      %273 = vmatpush2.xpose.msra.mxu0 0.0
      %274 = vmatprep.subr.mxu0 0.0
      %275 = vmatpush2.xpose.msra.mxu0 0.0
      %276 = vmatprep.subr.mxu0 0.0
      %277 = vmatpush2.xpose.msra.mxu0 0.0
      %278 = vmatprep.subr.mxu0 0.0
      %279 = vmatpush2.xpose.msra.mxu0 0.0
      %280 = vmatprep.subr.mxu0 0.0
      %281 = vmatpush2.xpose.msra.mxu0 0.0
      %282 = vmatprep.subr.mxu0 0.0
      %283 = vmatpush2.xpose.msra.mxu0 0.0
      %284 = vmatprep.subr.mxu0 0.0
      %285 = vmatpush2.xpose.msra.mxu0 0.0
      %286 = vmatprep.subr.mxu0 0.0
      %287 = vmatpush2.xpose.msra.mxu0 0.0
      %288 = vmatprep.subr.mxu0 0.0
      %289 = vmatpush2.xpose.msra.mxu0 0.0
      %290 = vmatprep.subr.mxu0 0.0
      %291 = vmatpush2.xpose.msra.mxu0 0.0
      %292 = vmatprep.mubr.f32.mxu0 %v216
      %293 = vmatmul.mubr.f32.gmra.mxu0 %v213
      %v294 = vpop.f32.mrf.mxu0
      %v295 = vadd.f32 0.0, %v294
      %v296 = vpop.f32.mrf.mxu0
      %297 = vdwg.mxu0
      %v298 = vadd.f32 %v227, %v295
      %vm299 = vcmask 27648
      %300 = vst.msk [vmem:[%s203] sm:$0xf] %vm299, %v298
      %s301 = sadd.s32 %s19, %s20
      %p302 = scmp.lt.s32.totalorder %s301, 1
      %s303 = scalar_select %p302, %s301, 1
      %s304 = smul.addr %s303, 4
      %s305 = scalar_lea.vmem %s1, %s304
      %s306 = sadd.s32 %s19, %s20
      %p307 = scmp.lt.s32.totalorder %s306, 1
      %s308 = scalar_select %p307, %s306, 1
      %s309 = smul.addr %s308, 4
      %s310 = scalar_lea.vmem %s2, %s309
      // Predicated region
      $region29: #{out_conv_forward.2} parent=23 // pred_check
        %p311 = pneg %p83
      $region30: #{out_conv_forward.2} parent=23 // pred_check_branch
        %313 = sbr.rel (%p311) target = $region32
      $region31: #{out_conv_forward.2} parent=23 // pred_region
        %s314 = sadd.s32 %s19, %s20
      $region32: #{out_conv_forward.2} parent=23 // pred_fallthru
        _
      // Predicated region
      $region33: #{out_conv_forward.2} parent=23 // pred_check
        %p315 = pneg %p111
      $region34: #{out_conv_forward.2} parent=23 // pred_check_branch
        %317 = sbr.rel (%p315) target = $region36
      $region35: #{out_conv_forward.2} parent=23 // pred_region
        %s318 = sadd.s32 %s19, %s20
      $region36: #{out_conv_forward.2} parent=23 // pred_fallthru
        _
    $region24: #{out_conv_forward.2} parent=5 // pred_fallthru
      _
    %p319 = scmp.le.s32.totalorder 2, %s9
    // Predicated region
    $region37: #{out_conv_forward.2} parent=5 // pred_check
      %p320 = pneg %p319
    $region38: #{out_conv_forward.2} parent=5 // pred_check_branch
      %322 = sbr.rel (%p320) target = $region40
    $region39: #{out_conv_forward.2} parent=5 // pred_region
      %s323 = ssub.s32 %s9, 2
      // Predicated region
      $region41: #{out_conv_forward.2} parent=39 // pred_check
        %p324 = pneg %p89
      $region42: #{out_conv_forward.2} parent=39 // pred_check_branch
        %326 = sbr.rel (%p324) target = $region44
      $region43: #{out_conv_forward.2} parent=39 // pred_region
        %s327 = sadd.s32 %s22, %s23
        %p328 = scmp.lt.s32.totalorder %s327, 1
        %s329 = scalar_select %p328, %s327, 1
        %s330 = smul.addr %s329, 4
        %s331 = scalar_lea.vmem %s1, %s330
      $region44: #{out_conv_forward.2} parent=39 // pred_fallthru
        _
      // Predicated region
      $region45: #{out_conv_forward.2} parent=39 // pred_check
        %p332 = pneg %p117
      $region46: #{out_conv_forward.2} parent=39 // pred_check_branch
        %334 = sbr.rel (%p332) target = $region48
      $region47: #{out_conv_forward.2} parent=39 // pred_region
        %s335 = sadd.s32 %s22, %s23
        %p336 = scmp.lt.s32.totalorder %s335, 1
        %s337 = scalar_select %p336, %s335, 1
        %s338 = smul.addr %s337, 4
        %s339 = scalar_lea.vmem %s2, %s338
      $region48: #{out_conv_forward.2} parent=39 // pred_fallthru
        _
    $region40: #{out_conv_forward.2} parent=5 // pred_fallthru
      _
  $region6: #{out_conv_forward.2} parent=0 // loop_footer
    %s13 = sadd.s32 1, %s9
  $region7: #{out_conv_forward.2} parent=0 // loop_footer_branch
    %8 = sbr.rel target = $region3
  $region8: #{out_conv_forward.2} parent=0 // loop_exit
    _

// kernel: out_conv_forward.3
$region0: #{out_conv_forward.3}
  #allocation0 [shape = 'u32[]', space=smem, size = 0x4, offset = 0x4, fixed_abs, tag = 'smem constant byte address 0x4 - core index']
  #allocation1 [shape = 'u32[144,128]{1,0:T(1,128)}', space=vmem, size = 0x12000, scoped, tag = 'internal scratch']
  %s0 = inlined_call_operand.vmem [shape: f32[6,4], index: 0, kind: input, shape index: {}]
  %s1 = inlined_call_operand.vmem [shape: f32[6,1], index: 1, kind: input, shape index: {}]
  %s2 = inlined_call_operand.vmem [shape: f32[2,4,256], index: 2, kind: input, shape index: {}]
  %s3 = inlined_call_operand.vmem [shape: f32[2,6,256], index: 3, kind: output, shape index: {}]
  %s4 = sld [smem:[#allocation0]]
  $region45: #{out_conv_forward.3} parent=0
    _
  %s6 = ssub.s32 1, %s4
  %s7 = scalar_select 0, %s6, %s4
  loop: start=0, step=1, limit=4
  $region2: #{out_conv_forward.3} parent=0 // loop_pre_header
    _
  $region3: #{out_conv_forward.3} parent=0 // loop_header
    %s9 = sphi 0, %s13
    %p10 = scmp.ge.s32.totalorder %s9, 4
    %s16 = sphi 0, %s28
    %s17 = sphi 0, %s24
    %s18 = sphi 0, %s16
    %s19 = sphi 0, %s17
    %s20 = sphi 0, %s18
    %s21 = sphi 0, %s19
    %s29 = sphi 0, %s29
    %s31 = sphi 0, %s29
    %s32 = sphi 0, %s31
    %s46 = sphi 0, %s32
    %s50 = sphi 0, %s50
    %s52 = sphi 0, %s50
    %s53 = sphi 0, %s52
    %s67 = sphi 0, %s53
    %s75 = sphi 0, %s77
    %s78 = sphi 0, %s75
    %s79 = sphi 0, %s78
    %s95 = sphi 0, %s79
    %s103 = sphi 0, %s105
    %s106 = sphi 0, %s103
    %s107 = sphi 0, %s106
    %s123 = sphi 0, %s107
  $region4: #{out_conv_forward.3} parent=0 // loop_header_branch
    %12 = sbr.rel (%p10) target = $region8
  $region5: #{out_conv_forward.3} parent=0 // loop_body
    %s14 = ssub.s32 %s9, 1
    %s15 = ssub.s32 %s9, 2
    %s22 = sadd.s32 1, %s17
    %p23 = scmp.ge.s32.totalorder %s22, 1
    %s24 = scalar_select %p23, 0, %s22
    %s25 = sadd.s32 1, %s16
    %s26 = scalar_select %p23, %s25, %s16
    %p27 = scmp.ge.s32.totalorder %s26, 2
    %s28 = scalar_select %p27, 0, %s26
    %s30 = sadd.s32 %s29, 1
    %p33 = scmp.eq.s32.totalorder %s9, 1
    %p34 = scmp.ne.s32.totalorder %s29, %s31
    %p35 = scmp.eq.s32.totalorder %s9, 0
    %p36 = por %p34, %p35
    %p37 = scmp.ne.s32.totalorder %s29, %s31
    %p38 = scmp.eq.s32.totalorder %s14, 1
    %p39 = por %p37, %p38
    %p40 = scmp.ne.s32.totalorder %s31, %s32
    %p41 = scmp.eq.s32.totalorder %s14, 0
    %p42 = por %p40, %p41
    %p43 = scmp.ne.s32.totalorder %s31, %s32
    %p44 = scmp.eq.s32.totalorder %s15, 1
    %p45 = por %p43, %p44
    %p47 = scmp.ne.s32.totalorder %s32, %s46
    %p48 = scmp.eq.s32.totalorder %s15, 0
    %p49 = por %p47, %p48
    %s51 = sadd.s32 %s50, 1
    %p54 = scmp.eq.s32.totalorder %s9, 1
    %p55 = scmp.ne.s32.totalorder %s50, %s52
    %p56 = scmp.eq.s32.totalorder %s9, 0
    %p57 = por %p55, %p56
    %p58 = scmp.ne.s32.totalorder %s50, %s52
    %p59 = scmp.eq.s32.totalorder %s14, 1
    %p60 = por %p58, %p59
    %p61 = scmp.ne.s32.totalorder %s52, %s53
    %p62 = scmp.eq.s32.totalorder %s14, 0
    %p63 = por %p61, %p62
    %p64 = scmp.ne.s32.totalorder %s52, %s53
    %p65 = scmp.eq.s32.totalorder %s15, 1
    %p66 = por %p64, %p65
    %p68 = scmp.ne.s32.totalorder %s53, %s67
    %p69 = scmp.eq.s32.totalorder %s15, 0
    %p70 = por %p68, %p69
    %s71 = ssub.s32 %s16, %s28
    %s72 = ssub.s32 %s17, %s24
    %s73 = sor.u32 %s71, %s72
    %p74 = scmp.eq.s32.totalorder %s73, 0
    %s76 = sadd.s32 %s75, 1
    %s77 = scalar_select %p74, %s75, %s76
    %p80 = pneg %p74
    %p81 = scmp.eq.s32.totalorder %s9, 1
    %p82 = por %p80, %p81
    %p83 = scmp.ne.s32.totalorder %s75, %s78
    %p84 = scmp.eq.s32.totalorder %s9, 0
    %p85 = por %p83, %p84
    %p86 = scmp.ne.s32.totalorder %s75, %s78
    %p87 = scmp.eq.s32.totalorder %s14, 1
    %p88 = por %p86, %p87
    %p89 = scmp.ne.s32.totalorder %s78, %s79
    %p90 = scmp.eq.s32.totalorder %s14, 0
    %p91 = por %p89, %p90
    %p92 = scmp.ne.s32.totalorder %s78, %s79
    %p93 = scmp.eq.s32.totalorder %s15, 1
    %p94 = por %p92, %p93
    %p96 = scmp.ne.s32.totalorder %s79, %s95
    %p97 = scmp.eq.s32.totalorder %s15, 0
    %p98 = por %p96, %p97
    %s99 = ssub.s32 %s16, %s28
    %s100 = ssub.s32 %s17, %s24
    %s101 = sor.u32 %s99, %s100
    %p102 = scmp.eq.s32.totalorder %s101, 0
    %s104 = sadd.s32 %s103, 1
    %s105 = scalar_select %p102, %s103, %s104
    %p108 = pneg %p102
    %p109 = scmp.eq.s32.totalorder %s9, 1
    %p110 = por %p108, %p109
    %p111 = scmp.ne.s32.totalorder %s103, %s106
    %p112 = scmp.eq.s32.totalorder %s9, 0
    %p113 = por %p111, %p112
    %p114 = scmp.ne.s32.totalorder %s103, %s106
    %p115 = scmp.eq.s32.totalorder %s14, 1
    %p116 = por %p114, %p115
    %p117 = scmp.ne.s32.totalorder %s106, %s107
    %p118 = scmp.eq.s32.totalorder %s14, 0
    %p119 = por %p117, %p118
    %p120 = scmp.ne.s32.totalorder %s106, %s107
    %p121 = scmp.eq.s32.totalorder %s15, 1
    %p122 = por %p120, %p121
    %p124 = scmp.ne.s32.totalorder %s107, %s123
    %p125 = scmp.eq.s32.totalorder %s15, 0
    %p126 = por %p124, %p125
    %p127 = scmp.le.s32.totalorder 1, %s9
    %p128 = scmp.lt.s32.totalorder %s9, 3
    %p129 = pnand %p127, %p128
    %p130 = pneg %p129
    // Predicated region
    $region9: #{out_conv_forward.3} parent=5 // pred_check
      _
    $region10: #{out_conv_forward.3} parent=5 // pred_check_branch
      %132 = sbr.rel (%p129) target = $region12
    $region11: #{out_conv_forward.3} parent=5 // pred_region
      %s133 = ssub.s32 %s9, 1
      // Predicated region
      $region13: #{out_conv_forward.3} parent=11 // pred_check
        %p134 = pneg %p42
      $region14: #{out_conv_forward.3} parent=11 // pred_check_branch
        %136 = sbr.rel (%p134) target = $region16
      $region15: #{out_conv_forward.3} parent=11 // pred_region
        _
      $region16: #{out_conv_forward.3} parent=11 // pred_fallthru
        _
      // Predicated region
      $region17: #{out_conv_forward.3} parent=11 // pred_check
        %p137 = pneg %p63
      $region18: #{out_conv_forward.3} parent=11 // pred_check_branch
        %139 = sbr.rel (%p137) target = $region20
      $region19: #{out_conv_forward.3} parent=11 // pred_region
        _
      $region20: #{out_conv_forward.3} parent=11 // pred_fallthru
        _
    $region12: #{out_conv_forward.3} parent=5 // pred_fallthru
      _
    %p140 = scmp.lt.s32.totalorder %s9, 2
    // Predicated region
    $region21: #{out_conv_forward.3} parent=5 // pred_check
      %p141 = pneg %p140
    $region22: #{out_conv_forward.3} parent=5 // pred_check_branch
      %143 = sbr.rel (%p141) target = $region24
    $region23: #{out_conv_forward.3} parent=5 // pred_region
      // Predicated region
      $region25: #{out_conv_forward.3} parent=23 // pred_check
        %p144 = pneg %p85
      $region26: #{out_conv_forward.3} parent=23 // pred_check_branch
        %146 = sbr.rel (%p144) target = $region28
      $region27: #{out_conv_forward.3} parent=23 // pred_region
        %s147 = smul.u32 2, %s17
        %p148 = scmp.lt.s32.totalorder %s16, 1
        %s149 = scalar_select %p148, %s16, 1
        %p150 = scmp.lt.s32.totalorder %s147, 1
        %s151 = scalar_select %p150, %s147, 1
        %s152 = smul.addr %s149, 2
        %s153 = sadd.s32 %s151, %s152
        %s154 = smul.addr %s153, 4
        %s155 = scalar_lea.vmem %s2, %s154
        %s156 = smul.u32 2, %s17
      $region28: #{out_conv_forward.3} parent=23 // pred_fallthru
        _
    $region24: #{out_conv_forward.3} parent=5 // pred_fallthru
      _
    %p157 = scmp.le.s32.totalorder 1, %s9
    %p158 = scmp.lt.s32.totalorder %s9, 3
    %p159 = pnand %p157, %p158
    %p160 = pneg %p159
    // Predicated region
    $region29: #{out_conv_forward.3} parent=5 // pred_check
      _
    $region30: #{out_conv_forward.3} parent=5 // pred_check_branch
      %162 = sbr.rel (%p159) target = $region32
    $region31: #{out_conv_forward.3} parent=5 // pred_region
      %s163 = ssub.s32 %s9, 1
      %p164 = pneg %p42
      %p165 = pneg %p39
      %p166 = pneg %p63
      %p167 = pneg %p60
      %s168 = smul.u32 2, %s19
      %p169 = scmp.lt.s32.totalorder %s18, 1
      %s170 = scalar_select %p169, %s18, 1
      %p171 = scmp.lt.s32.totalorder %s168, 1
      %s172 = scalar_select %p171, %s168, 1
      %s173 = smul.addr %s170, 2
      %s174 = sadd.s32 %s172, %s173
      %s175 = smul.addr %s174, 4
      %s176 = scalar_lea.vmem %s2, %s175
      %p177 = pneg %p91
      %p178 = pneg %p88
      %p179 = pneg %p119
      %p180 = pneg %p116
      %s181 = smul.u32 2, %s19
      %p182 = scmp.lt.s32.totalorder %s18, 1
      %s183 = scalar_select %p182, %s18, 1
      %p184 = scmp.lt.s32.totalorder %s181, 1
      %s185 = scalar_select %p184, %s181, 1
      %s186 = smul.addr %s183, 2
      %s187 = sadd.s32 %s185, %s186
      %s188 = smul.addr %s187, 8
      %s189 = scalar_lea.vmem %s3, %s188
      %s190 = smul.u32 2, %s19
      %p191 = scmp.lt.s32.totalorder %s18, 1
      %s192 = scalar_select %p191, %s18, 1
      %p193 = scmp.lt.s32.totalorder %s190, 1
      %s194 = scalar_select %p193, %s190, 1
      %s195 = smul.addr %s192, 2
      %s196 = sadd.s32 %s194, %s195
      %s197 = smul.addr %s196, 4
      %s198 = scalar_lea.vmem %s2, %s197
      %s199 = smul.u32 2, %s19
      %s200 = smul.u32 2, %s19
      %p201 = scmp.lt.s32.totalorder %s18, 1
      %s202 = scalar_select %p201, %s18, 1
      %p203 = scmp.lt.s32.totalorder %s200, 1
      %s204 = scalar_select %p203, %s200, 1
      %s205 = smul.addr %s202, 2
      %s206 = sadd.s32 %s204, %s205
      %s207 = smul.addr %s206, 8
      %s208 = scalar_lea.vmem %s3, %s207
      %s209 = smul.u32 2, %s19
      %v210 = vld [vmem:[%s0] sm:$0x3f]
      %v211 = vld [vmem:[%s198] sm:$0xff]
      %v212 = vld [vmem:[%s1] sm:$0x3f]
      %214 = vset.pattern.permute.xlu0 0
      %215 = vperm.xlu0 %214, %v212
      %v216 = vpop.permute.xlu0 %215
      %v219 = vcombine.high %v211, %v211
      %vm220 = vcmask 31744
      %v222 = vsel %vm220, %v210, 0
      %vm224 = vcmask 1043456
      %v225 = vsel %vm224, %v211, 0
      %v227 = vsel %vm224, %v219, 0
      %229 = vmatprep.subr.mxu0 0.0
      %230 = vmatpush1.msra.mxu0 0.0
      %231 = vmatprep.subr.mxu0 0.0
      %232 = vmatpush1.msra.mxu0 0.0
      %233 = vmatprep.subr.mxu0 0.0
      %234 = vmatpush1.msra.mxu0 0.0
      %235 = vmatprep.subr.mxu0 0.0
      %236 = vmatpush1.msra.mxu0 0.0
      %237 = vmatprep.subr.mxu0 0.0
      %238 = vmatpush1.msra.mxu0 0.0
      %239 = vmatprep.subr.mxu0 0.0
      %240 = vmatpush1.msra.mxu0 0.0
      %241 = vmatprep.subr.mxu0 0.0
      %242 = vmatpush1.msra.mxu0 0.0
      %243 = vmatprep.subr.mxu0 0.0
      %244 = vmatpush1.msra.mxu0 0.0
      %245 = vmatprep.subr.mxu0 0.0
      %246 = vmatpush1.msra.mxu0 0.0
      %247 = vmatprep.subr.mxu0 0.0
      %248 = vmatpush1.msra.mxu0 0.0
      %249 = vmatprep.subr.mxu0 0.0
      %250 = vmatpush1.msra.mxu0 0.0
      %251 = vmatprep.subr.mxu0 0.0
      %252 = vmatpush1.msra.mxu0 0.0
      %253 = vmatprep.subr.mxu0 0.0
      %254 = vmatpush1.msra.mxu0 0.0
      %255 = vmatprep.subr.mxu0 0.0
      %256 = vmatpush1.msra.mxu0 0.0
      %257 = vmatprep.subr.mxu0 0.0
      %258 = vmatpush1.msra.mxu0 0.0
      %259 = vmatprep.subr.mxu0 %v227
      %260 = vmatpush1.msra.mxu0 %v225
      %261 = vmatprep.subr.mxu0 0.0
      %262 = vmatpush2.msra.mxu0 0.0
      %263 = vmatprep.subr.mxu0 0.0
      %264 = vmatpush2.msra.mxu0 0.0
      %265 = vmatprep.subr.mxu0 0.0
      %266 = vmatpush2.msra.mxu0 0.0
      %267 = vmatprep.subr.mxu0 0.0
      %268 = vmatpush2.msra.mxu0 0.0
      %269 = vmatprep.subr.mxu0 0.0
      %270 = vmatpush2.msra.mxu0 0.0
      %271 = vmatprep.subr.mxu0 0.0
      %272 = vmatpush2.msra.mxu0 0.0
      %273 = vmatprep.subr.mxu0 0.0
      %274 = vmatpush2.msra.mxu0 0.0
      %275 = vmatprep.subr.mxu0 0.0
      %276 = vmatpush2.msra.mxu0 0.0
      %277 = vmatprep.subr.mxu0 0.0
      %278 = vmatpush2.msra.mxu0 0.0
      %279 = vmatprep.subr.mxu0 0.0
      %280 = vmatpush2.msra.mxu0 0.0
      %281 = vmatprep.subr.mxu0 0.0
      %282 = vmatpush2.msra.mxu0 0.0
      %283 = vmatprep.subr.mxu0 0.0
      %284 = vmatpush2.msra.mxu0 0.0
      %285 = vmatprep.subr.mxu0 0.0
      %286 = vmatpush2.msra.mxu0 0.0
      %287 = vmatprep.subr.mxu0 0.0
      %288 = vmatpush2.msra.mxu0 0.0
      %289 = vmatprep.subr.mxu0 0.0
      %290 = vmatpush2.msra.mxu0 0.0
      %291 = vmatprep.subr.mxu0 0.0
      %292 = vmatpush2.msra.mxu0 0.0
      %293 = vmatprep.mubr.f32.mxu0 0.0
      %294 = vmatmul.mubr.f32.gmra.mxu0 %v222
      %v295 = vpop.f32.mrf.mxu0
      %v296 = vadd.f32 %v216, %v295
      %v297 = vpop.f32.mrf.mxu0
      %v298 = vadd.f32 %v216, %v297
      %299 = vdwg.mxu0
      %300 = vst [vmem:[%s208] sm:$0x3f] %v296
      %301 = vst [vmem:[%s208 + $0x8] sm:$0x3f] %v298
      %s302 = smul.u32 2, %s19
      %p303 = scmp.lt.s32.totalorder %s18, 1
      %s304 = scalar_select %p303, %s18, 1
      %p305 = scmp.lt.s32.totalorder %s302, 1
      %s306 = scalar_select %p305, %s302, 1
      %s307 = smul.addr %s304, 2
      %s308 = sadd.s32 %s306, %s307
      %s309 = smul.addr %s308, 8
      %s310 = scalar_lea.vmem %s3, %s309
      // Predicated region
      $region33: #{out_conv_forward.3} parent=31 // pred_check
        %p311 = pneg %p116
      $region34: #{out_conv_forward.3} parent=31 // pred_check_branch
        %313 = sbr.rel (%p311) target = $region36
      $region35: #{out_conv_forward.3} parent=31 // pred_region
        %s314 = smul.u32 2, %s19
      $region36: #{out_conv_forward.3} parent=31 // pred_fallthru
        _
    $region32: #{out_conv_forward.3} parent=5 // pred_fallthru
      _
    %p315 = scmp.le.s32.totalorder 2, %s9
    // Predicated region
    $region37: #{out_conv_forward.3} parent=5 // pred_check
      %p316 = pneg %p315
    $region38: #{out_conv_forward.3} parent=5 // pred_check_branch
      %318 = sbr.rel (%p316) target = $region40
    $region39: #{out_conv_forward.3} parent=5 // pred_region
      %s319 = ssub.s32 %s9, 2
      // Predicated region
      $region41: #{out_conv_forward.3} parent=39 // pred_check
        %p320 = pneg %p122
      $region42: #{out_conv_forward.3} parent=39 // pred_check_branch
        %322 = sbr.rel (%p320) target = $region44
      $region43: #{out_conv_forward.3} parent=39 // pred_region
        %s323 = smul.u32 2, %s21
        %p324 = scmp.lt.s32.totalorder %s20, 1
        %s325 = scalar_select %p324, %s20, 1
        %p326 = scmp.lt.s32.totalorder %s323, 1
        %s327 = scalar_select %p326, %s323, 1
        %s328 = smul.addr %s325, 2
        %s329 = sadd.s32 %s327, %s328
        %s330 = smul.addr %s329, 8
        %s331 = scalar_lea.vmem %s3, %s330
      $region44: #{out_conv_forward.3} parent=39 // pred_fallthru
        _
    $region40: #{out_conv_forward.3} parent=5 // pred_fallthru
      _
  $region6: #{out_conv_forward.3} parent=0 // loop_footer
    %s13 = sadd.s32 1, %s9
  $region7: #{out_conv_forward.3} parent=0 // loop_footer_branch
    %8 = sbr.rel target = $region3
  $region8: #{out_conv_forward.3} parent=0 // loop_exit
    _

</llo_original>
